<compile_context>
chip_gen: v7x
topology: tpu7x:2x2x1
jax: 0.10.0
libtpu: 0.0.40
codegen_flags: <defaults>
</compile_context>

<pallas_src>
import functools

import jax
import jax.numpy as jnp
from jax.experimental import pallas as pl
from jax.experimental.pallas import tpu as pltpu


# Conservative budget for all tiles (double/triple-buffered) — fits v7x's
# 64 MiB physical VMEM with headroom and v5e/v6e trivially.
_VMEM_BUDGET_BYTES = 24 * 1024 * 1024
_VMEM_LIMIT_BYTES = 40 * 1024 * 1024


def _round_up(x, m):
    return ((x + m - 1) // m) * m


# ----------------------------- kernels --------------------------------------


def _conv1d_kernel_fullk(x_ref, w_ref, b_ref, o_ref):
    """Single K pass: one MXU matmul + bias; no accumulator scratch needed."""
    acc = jnp.dot(x_ref[...], w_ref[...], preferred_element_type=jnp.float32)
    o_ref[...] = (acc + b_ref[...]).astype(o_ref.dtype)


def _conv1d_kernel_ktiled(x_ref, w_ref, b_ref, o_ref, acc_ref):
    """K-tiled path: f32 accumulator, bias folded into the k==0 init."""
    k = pl.program_id(2)

    @pl.when(k == 0)
    def _():
        # Bias fold: saves a full-tile VPU add + read-modify-write in the
        # (unhidden) epilogue of the last k step.
        acc_ref[...] = jnp.broadcast_to(
            b_ref[...].astype(jnp.float32), acc_ref.shape
        )

    acc_ref[...] += jnp.dot(
        x_ref[...], w_ref[...], preferred_element_type=jnp.float32
    )

    @pl.when(k == pl.num_programs(2) - 1)
    def _():
        o_ref[...] = acc_ref[...].astype(o_ref.dtype)


# --------------------------- tile selection ----------------------------------


def _choose_tiles(M, K, N, in_bytes, out_bytes, tm, tn, tk):
    """Biggest lane/MXU-aligned tiles that fit the VMEM budget."""
    kp_full = _round_up(K, 128)
    tm = min(256, _round_up(M, 8)) if tm is None else _round_up(tm, 8)
    tn = min(512, _round_up(N, 128)) if tn is None else _round_up(tn, 128)
    if tk is not None:
        return tm, tn, min(_round_up(tk, 128), kp_full)

    # Prefer tk == K (single K pass): the weight column slab stays resident in
    # VMEM across the inner row-tile loop and no f32 accumulator is needed.
    fullk_bytes = (
        2 * (tm * kp_full + kp_full * tn) * in_bytes  # x, W double-buffered
        + 2 * tm * tn * out_bytes                     # out double-buffered
        + 2 * tn * 4                                  # bias
    )
    if fullk_bytes <= _VMEM_BUDGET_BYTES:
        return tm, tn, kp_full

    # Fall back to a tiled K axis (very large nx layers on small-VMEM chips).
    tk = min(512, kp_full)

    def footprint(tm_, tn_, tk_):
        return (
            2 * tm_ * tk_ * in_bytes      # x tiles, double-buffered
            + 3 * tk_ * tn_ * in_bytes    # W tiles, triple-buffered
            + tm_ * tn_ * 4               # f32 accumulator scratch
            + 2 * tm_ * tn_ * out_bytes   # out tiles, double-buffered
            + 2 * tn_ * 4                 # bias
        )

    while footprint(tm, tn, tk) > _VMEM_BUDGET_BYTES and (
        tk > 128 or tn > 128 or tm > 8
    ):
        if tk > 128:
            tk //= 2
        elif tn > 128:
            tn //= 2
        else:
            tm = max(8, tm // 2)
    return tm, tn, tk


def _w_spec_ktiled(tk, tn):
    idx = lambda i, j, k: (k, j)
    try:
        # Deeper pipelining on the streamed weight slab hides DMA latency when
        # the inner K loop is short (mainly helps v5e's lower HBM bandwidth).
        return pl.BlockSpec((tk, tn), idx, pipeline_mode=pl.Buffered(3))
    except (TypeError, AttributeError):
        return pl.BlockSpec((tk, tn), idx)


# ------------------------------ wrapper --------------------------------------


@functools.partial(
    jax.jit, static_argnames=("compute_dtype", "tm", "tn", "tk")
)
def conv1d(x, weight, bias, *, compute_dtype=jnp.bfloat16, tm=None, tn=None,
           tk=None):
    """GPT-2 Conv1D: y = x @ weight + bias, feature dim last."""
    orig_shape = x.shape
    nx = orig_shape[-1]
    nf = weight.shape[-1]
    out_dtype = x.dtype

    x2d = x.reshape(-1, nx)
    M, K = x2d.shape
    N = nf

    cdt = jnp.dtype(compute_dtype)
    in_bytes = cdt.itemsize
    out_bytes = jnp.dtype(out_dtype).itemsize

    tm, tn, tk = _choose_tiles(M, K, N, in_bytes, out_bytes, tm, tn, tk)

    Mp = _round_up(M, tm)
    Np = _round_up(N, tn)
    Kp = _round_up(K, tk)
    n_k = Kp // tk

    # Zero padding is exact for matmul + bias; padded rows/cols are sliced off.
    x_p = jnp.pad(x2d, ((0, Mp - M), (0, Kp - K))).astype(cdt)
    w_p = jnp.pad(weight, ((0, Kp - K), (0, Np - N))).astype(cdt)
    b_p = jnp.pad(bias, (0, Np - N)).astype(jnp.float32).reshape(1, Np)

    cost = pl.CostEstimate(
        flops=2 * M * K * N,
        transcendentals=0,
        bytes_accessed=(
            Mp * Kp * in_bytes + Kp * Np * in_bytes + Np * 4
            + Mp * Np * out_bytes
        ),
    )

    if n_k == 1:
        # 2-D grid (j outer, i inner): the (Kp, tn) weight slab's block index
        # depends only on j, so it is fetched once per column tile and stays
        # resident across the inner row-tile loop.
        grid = (Np // tn, Mp // tm)
        out_p = pl.pallas_call(
            _conv1d_kernel_fullk,
            out_shape=jax.ShapeDtypeStruct((Mp, Np), out_dtype),
            grid_spec=pltpu.PrefetchScalarGridSpec(
                num_scalar_prefetch=0,
                grid=grid,
                in_specs=[
                    pl.BlockSpec((tm, Kp), lambda j, i: (i, 0)),  # x row tile
                    pl.BlockSpec((Kp, tn), lambda j, i: (0, j)),  # W col slab
                    pl.BlockSpec((1, tn), lambda j, i: (0, j)),   # bias
                ],
                out_specs=pl.BlockSpec((tm, tn), lambda j, i: (i, j)),
            ),
            compiler_params=pltpu.CompilerParams(
                dimension_semantics=("parallel", "parallel"),
                vmem_limit_bytes=_VMEM_LIMIT_BYTES,
            ),
            cost_estimate=cost,
        )(x_p, w_p, b_p)
    else:
        grid = (Mp // tm, Np // tn, n_k)
        out_p = pl.pallas_call(
            _conv1d_kernel_ktiled,
            out_shape=jax.ShapeDtypeStruct((Mp, Np), out_dtype),
            grid_spec=pltpu.PrefetchScalarGridSpec(
                num_scalar_prefetch=0,
                grid=grid,
                in_specs=[
                    pl.BlockSpec((tm, tk), lambda i, j, k: (i, k)),  # x tile
                    _w_spec_ktiled(tk, tn),                          # W tile
                    pl.BlockSpec((1, tn), lambda i, j, k: (0, j)),   # bias
                ],
                out_specs=pl.BlockSpec((tm, tn), lambda i, j, k: (i, j)),
                scratch_shapes=[pltpu.VMEM((tm, tn), jnp.float32)],
            ),
            compiler_params=pltpu.CompilerParams(
                dimension_semantics=("parallel", "parallel", "arbitrary"),
                vmem_limit_bytes=_VMEM_LIMIT_BYTES,
            ),
            cost_estimate=cost,
        )(x_p, w_p, b_p)

    out2d = out_p[:M, :N]
    return out2d.reshape(*orig_shape[:-1], N)


if __name__ == "__main__":
    # Small shapes consistent with the module: batch=2, seq=8, nx=32, nf=64.
    B, S, NX, NF = 2, 8, 32, 64

    key = jax.random.PRNGKey(0)
    kx, kw, kx2, kw2 = jax.random.split(key, 4)

    x = jax.random.normal(kx, (B, S, NX), dtype=jnp.float32)
    # Matches nn.init.normal_(w, std=0.02); bias initialized to zeros.
    weight = 0.02 * jax.random.normal(kw, (NX, NF), dtype=jnp.float32)
    bias = jnp.zeros((NF,), dtype=jnp.float32)

    y_ref = (x.reshape(-1, NX) @ weight + bias).reshape(B, S, NF)

    # 1) Default path: bf16 MXU inputs + f32 accumulate, single-K-pass kernel.
    y = jax.block_until_ready(conv1d(x, weight, bias))
    assert y.shape == (B, S, NF)
    assert jnp.allclose(y, y_ref, atol=1e-2, rtol=1e-2)

    # 2) Exact-semantics path: f32 compute, same kernel, tight tolerance.
    y32 = jax.block_until_ready(
        conv1d(x, weight, bias, compute_dtype=jnp.float32)
    )
    assert jnp.allclose(y32, y_ref, atol=1e-4, rtol=1e-4)

    # 3) Exercise the K-tiled accumulator path (multiple K steps, bias fold,
    #    and N padding to the 128-lane tile) at a slightly larger nx.
    NX2 = 256
    x2 = jax.random.normal(kx2, (B, S, NX2), dtype=jnp.float32)
    weight2 = 0.02 * jax.random.normal(kw2, (NX2, NF), dtype=jnp.float32)
    bias2 = 0.1 * jnp.ones((NF,), dtype=jnp.float32)
    y2_ref = (x2.reshape(-1, NX2) @ weight2 + bias2).reshape(B, S, NF)
    y2 = jax.block_until_ready(
        conv1d(x2, weight2, bias2, compute_dtype=jnp.float32, tk=128)
    )
    assert jnp.allclose(y2, y2_ref, atol=1e-4, rtol=1e-4)

    print("KERNEL_OK")
</pallas_src>

<mosaic_0001>
module attributes {stable_mosaic.version = 11 : i64} {
  func.func @_conv1d_kernel_fullk(%arg0: i32, %arg1: i32, %arg2: memref<16x128xbf16, #tpu.memory_space<vmem>>, %arg3: memref<128x128xbf16, #tpu.memory_space<vmem>>, %arg4: memref<1x128xf32, #tpu.memory_space<vmem>>, %arg5: memref<16x128xf32, #tpu.memory_space<vmem>>) attributes {dimension_semantics = [#tpu.dimension_semantics<parallel>, #tpu.dimension_semantics<parallel>], iteration_bounds = array<i64: 1, 1>, scalar_prefetch = 0 : i64, scratch_operands = 0 : i64, tpu.core_type = #tpu.core_type<tc>, window_params = [{transform_indices = @transform_0, window_bounds = array<i64: 16, 128>}, {transform_indices = @transform_1, window_bounds = array<i64: 128, 128>}, {transform_indices = @transform_2, window_bounds = array<i64: 1, 128>}, {transform_indices = @transform_3, window_bounds = array<i64: 16, 128>}]} {
    %c0 = arith.constant 0 : index
    %c0_0 = arith.constant 0 : index
    %0 = vector.load %arg2[%c0, %c0_0] : memref<16x128xbf16, #tpu.memory_space<vmem>>, vector<16x128xbf16>
    %c0_1 = arith.constant 0 : index
    %c0_2 = arith.constant 0 : index
    %1 = vector.load %arg3[%c0_1, %c0_2] : memref<128x128xbf16, #tpu.memory_space<vmem>>, vector<128x128xbf16>
    %cst = arith.constant dense<0.000000e+00> : vector<16x128xf32>
    %2 = tpu.matmul %0, %1, %cst {dimension_numbers = #tpu.dot_dimension_numbers<[1], [0], [0], [1], [0, 0, 1, 1], [], []>} : vector<16x128xbf16>, vector<128x128xbf16>, vector<16x128xf32> -> vector<16x128xf32>
    %c0_3 = arith.constant 0 : index
    %c0_4 = arith.constant 0 : index
    %3 = vector.load %arg4[%c0_3, %c0_4] : memref<1x128xf32, #tpu.memory_space<vmem>>, vector<1x128xf32>
    %4 = vector.broadcast %3 : vector<1x128xf32> to vector<16x128xf32>
    %5 = arith.addf %2, %4 : vector<16x128xf32>
    %c0_5 = arith.constant 0 : index
    %c0_6 = arith.constant 0 : index
    %6 = vector.load %arg5[%c0_5, %c0_6] : memref<16x128xf32, #tpu.memory_space<vmem>>, vector<16x128xf32>
    tpu.vector_store %arg5[%c0_5, %c0_6], %5 {strides = array<i32>} : memref<16x128xf32, #tpu.memory_space<vmem>>, vector<16x128xf32>,
    return
  }
  func.func @transform_0(%arg0: i32, %arg1: i32) -> (i32, i32) {
    %c0_i32 = arith.constant 0 : i32
    %c0_i32_0 = arith.constant 0 : i32
    return %arg1, %c0_i32 : i32, i32
  }
  func.func @transform_1(%arg0: i32, %arg1: i32) -> (i32, i32) {
    %c0_i32 = arith.constant 0 : i32
    %c0_i32_0 = arith.constant 0 : i32
    return %c0_i32, %arg0 : i32, i32
  }
  func.func @transform_2(%arg0: i32, %arg1: i32) -> (i32, i32) {
    %c0_i32 = arith.constant 0 : i32
    %c0_i32_0 = arith.constant 0 : i32
    return %c0_i32, %arg0 : i32, i32
  }
  func.func @transform_3(%arg0: i32, %arg1: i32) -> (i32, i32) {
    %c0_i32 = arith.constant 0 : i32
    return %arg1, %arg0 : i32, i32
  }
}

</mosaic_0001>

<llo_original>
// kernel: conv1d.1
$region0: #{conv1d.1}
  #allocation0 [shape = 'u32[]', space=smem, size = 0x4, offset = 0x4, fixed_abs, tag = 'smem constant byte address 0x4 - core index']
  #allocation1 [shape = 'u32[144,128]{1,0:T(1,128)}', space=vmem, size = 0x12000, scoped, tag = 'internal scratch']
  %s0 = inlined_call_operand.vmem [shape: bf16[16,128], index: 0, kind: input, shape index: {}]
  %s1 = inlined_call_operand.vmem [shape: bf16[128,128], index: 1, kind: input, shape index: {}]
  %s2 = inlined_call_operand.vmem [shape: f32[1,128], index: 2, kind: input, shape index: {}]
  %s3 = inlined_call_operand.vmem [shape: f32[16,128], index: 3, kind: output, shape index: {}]
  %s4 = sld [smem:[#allocation0]]
  $region22: #{conv1d.1} parent=0
    _
  %s6 = ssub.s32 1, %s4
  %s7 = scalar_select 0, %s6, %s4
  // Predicated region
  $region2: #{conv1d.1} parent=0 // pred_check
    _
  $region3: #{conv1d.1} parent=0 // pred_check_branch
    %9 = sbr.rel (0) target = $region5
  $region4: #{conv1d.1} parent=0 // pred_region
    _
  $region5: #{conv1d.1} parent=0 // pred_fallthru
    _
  // Predicated region
  $region6: #{conv1d.1} parent=0 // pred_check
    _
  $region7: #{conv1d.1} parent=0 // pred_check_branch
    %11 = sbr.rel (0) target = $region9
  $region8: #{conv1d.1} parent=0 // pred_region
    _
  $region9: #{conv1d.1} parent=0 // pred_fallthru
    _
  // Predicated region
  $region10: #{conv1d.1} parent=0 // pred_check
    _
  $region11: #{conv1d.1} parent=0 // pred_check_branch
    %13 = sbr.rel (0) target = $region13
  $region12: #{conv1d.1} parent=0 // pred_region
    _
  $region13: #{conv1d.1} parent=0 // pred_fallthru
    _
  %v15 = vld [vmem:[%s0] sm:$0xf]
  %v16 = vld [vmem:[%s0 + $0x4] sm:$0xf]
  %v17 = vld [vmem:[%s1] sm:$0xf]
  %v18 = vld [vmem:[%s1 + $0x4] sm:$0xf]
  %v19 = vld [vmem:[%s1 + $0x8] sm:$0xf]
  %v20 = vld [vmem:[%s1 + $0xc] sm:$0xf]
  %v21 = vld [vmem:[%s1 + $0x10] sm:$0xf]
  %v22 = vld [vmem:[%s1 + $0x14] sm:$0xf]
  %v23 = vld [vmem:[%s1 + $0x18] sm:$0xf]
  %v24 = vld [vmem:[%s1 + $0x1c] sm:$0xf]
  %v25 = vld [vmem:[%s1 + $0x20] sm:$0xf]
  %v26 = vld [vmem:[%s1 + $0x24] sm:$0xf]
  %v27 = vld [vmem:[%s1 + $0x28] sm:$0xf]
  %v28 = vld [vmem:[%s1 + $0x2c] sm:$0xf]
  %v29 = vld [vmem:[%s1 + $0x30] sm:$0xf]
  %v30 = vld [vmem:[%s1 + $0x34] sm:$0xf]
  %v31 = vld [vmem:[%s1 + $0x38] sm:$0xf]
  %v32 = vld [vmem:[%s1 + $0x3c] sm:$0xf]
  %v33 = vld [vmem:[%s2] sm:$0x1]
  %v35 = vlaneseq
  %v36 = vshrl.u32 %v35, 7
  %v37 = vsub.s32 0, %v36
  %v38 = vrot.slane %v33, %v37
  %v42 = vunpack.c.l.b16 %v15
  %v43 = vunpack.c.l.b16 %v16
  %v44 = vpack.c.b16 %v43, %v42
  %v62 = vunpack.c.l.b16 %v17
  %v63 = vunpack.c.l.b16 %v18
  %v64 = vunpack.c.l.b16 %v19
  %v65 = vunpack.c.l.b16 %v20
  %v66 = vunpack.c.l.b16 %v21
  %v67 = vunpack.c.l.b16 %v22
  %v68 = vunpack.c.l.b16 %v23
  %v69 = vunpack.c.l.b16 %v24
  %v70 = vunpack.c.l.b16 %v25
  %v71 = vunpack.c.l.b16 %v26
  %v72 = vunpack.c.l.b16 %v27
  %v73 = vunpack.c.l.b16 %v28
  %v74 = vunpack.c.l.b16 %v29
  %v75 = vunpack.c.l.b16 %v30
  %v76 = vunpack.c.l.b16 %v31
  %v77 = vunpack.c.l.b16 %v32
  %v78 = vpack.c.b16 %v63, %v62
  %v79 = vpack.c.b16 %v65, %v64
  %v80 = vpack.c.b16 %v67, %v66
  %v81 = vpack.c.b16 %v69, %v68
  %v82 = vpack.c.b16 %v71, %v70
  %v83 = vpack.c.b16 %v73, %v72
  %v84 = vpack.c.b16 %v75, %v74
  %v85 = vpack.c.b16 %v77, %v76
  %94 = vmatprep.subr.bf16.mxu0 0
  %95 = vmatpush1.bf16.msra.mxu0 %v78
  %96 = vmatprep.subr.bf16.mxu0 0
  %97 = vmatpush1.bf16.msra.mxu0 %v79
  %98 = vmatprep.subr.bf16.mxu0 0
  %99 = vmatpush1.bf16.msra.mxu0 %v80
  %100 = vmatprep.subr.bf16.mxu0 0
  %101 = vmatpush1.bf16.msra.mxu0 %v81
  %102 = vmatprep.subr.bf16.mxu0 0
  %103 = vmatpush1.bf16.msra.mxu0 %v82
  %104 = vmatprep.subr.bf16.mxu0 0
  %105 = vmatpush1.bf16.msra.mxu0 %v83
  %106 = vmatprep.subr.bf16.mxu0 0
  %107 = vmatpush1.bf16.msra.mxu0 %v84
  %108 = vmatprep.subr.bf16.mxu0 0
  %109 = vmatpush1.bf16.msra.mxu0 %v85
  %110 = vmatprep.subr.bf16.mxu0 0
  %111 = vmatpush1.bf16.msra.mxu0 0
  %112 = vmatprep.subr.bf16.mxu0 0
  %113 = vmatpush1.bf16.msra.mxu0 0
  %114 = vmatprep.subr.bf16.mxu0 0
  %115 = vmatpush1.bf16.msra.mxu0 0
  %116 = vmatprep.subr.bf16.mxu0 0
  %117 = vmatpush1.bf16.msra.mxu0 0
  %118 = vmatprep.subr.bf16.mxu0 0
  %119 = vmatpush1.bf16.msra.mxu0 0
  %120 = vmatprep.subr.bf16.mxu0 0
  %121 = vmatpush1.bf16.msra.mxu0 0
  %122 = vmatprep.subr.bf16.mxu0 0
  %123 = vmatpush1.bf16.msra.mxu0 0
  %124 = vmatprep.subr.bf16.mxu0 0
  %125 = vmatpush1.bf16.msra.mxu0 0
  %126 = vmatprep.mubr.bf16.mxu0 0
  %127 = vmatmul.mubr.bf16.gmra.mrb[0].mxu0 %v44
  %v128 = vpop.f32.mrb[0].mxu0
  %v129 = vadd.f32 %v38, %v128
  %v130 = vpop.f32.mrb[0].mxu0
  %v131 = vpop.f32.mrb[0].mxu0
  %v132 = vadd.f32 %v38, %v131
  %v133 = vpop.f32.mrb[0].mxu0
  %134 = vdwg.mxu0
  %135 = vst [vmem:[%s3] sm:$0xff] %v129
  %136 = vst [vmem:[%s3 + $0x8] sm:$0xff] %v132
  // Predicated region
  $region14: #{conv1d.1} parent=0 // pred_check
    _
  $region15: #{conv1d.1} parent=0 // pred_check_branch
    %138 = sbr.rel (0) target = $region17
  $region16: #{conv1d.1} parent=0 // pred_region
    _
  $region17: #{conv1d.1} parent=0 // pred_fallthru
    _
  // Predicated region
  $region18: #{conv1d.1} parent=0 // pred_check
    _
  $region19: #{conv1d.1} parent=0 // pred_check_branch
    %140 = sbr.rel (0) target = $region21
  $region20: #{conv1d.1} parent=0 // pred_region
    _
  $region21: #{conv1d.1} parent=0 // pred_fallthru
    _

</llo_original>
